<compile_context>
chip_gen: v7x
topology: tpu7x:2x2x1
jax: 0.10.0
libtpu: 0.0.40
codegen_flags: <defaults>
</compile_context>

<pallas_src>
import jax
import jax.numpy as jnp
from jax.experimental import pallas as pl
from jax.experimental.pallas import tpu as pltpu

PACK = 8          # batch rows packed per lane-dense super-row
OUT_DIM = 39      # fc2 output width from the PyTorch module


def _round_up(n, m):
    return ((n + m - 1) // m) * m


def _mlp_kernel(x_ref, w1_ref, b1_ref, w2_ref, b2_ref, o_ref):
    # Fully fused: both (block-diagonal) matmuls + bias + ReLU on one VMEM tile.
    h = jnp.dot(x_ref[...], w1_ref[...], preferred_element_type=jnp.float32)
    h = jnp.maximum(h + b1_ref[...], 0.0)
    o = jnp.dot(h, w2_ref[...], preferred_element_type=jnp.float32)
    o_ref[...] = (o + b2_ref[...]).astype(o_ref.dtype)


def radius_network_forward(x, w1, b1, w2, b2, *, target_packed_tile=2048):
    """x: (B, input_size) f32; w1: (input_size, hidden); b1: (1, hidden);
    w2: (hidden, 39); b2: (1, 39).  Returns (B, 39) f32."""
    B, in_dim = x.shape
    hidden = w1.shape[1]
    out_dim = w2.shape[1]

    if B == 0:
        return jnp.zeros((0, out_dim), dtype=jnp.float32)

    # ---- pack-by-8 into lane-dense super-rows (review item #1) -------------
    b8 = _round_up(B, PACK)
    if b8 != B:
        # Rare case (B % 8 != 0): pad < 8 rows so the pack reshape is legal.
        x = jnp.pad(x, ((0, b8 - B), (0, 0)))
    bp = b8 // PACK                                 # packed rows
    in_p, hid_p, out_p = PACK * in_dim, PACK * hidden, PACK * out_dim

    xp = x.reshape(bp, in_p)                        # free (contiguous) reshape
    eye = jnp.eye(PACK, dtype=w1.dtype)
    w1_bd = jnp.kron(eye, w1)                       # (8*in,  8*hidden) block-diag
    w2_bd = jnp.kron(eye, w2)                       # (8*hid, 8*39)     block-diag
    b1_t = jnp.tile(jnp.asarray(b1).reshape(1, hidden), (1, PACK))    # (1, 8*hidden)
    b2_t = jnp.tile(jnp.asarray(b2).reshape(1, out_dim), (1, PACK))   # (1, 8*39)

    # ---- tile sizing (review items #2 / #3) ---------------------------------
    if bp <= 8:
        eff_tile = bp                               # one full-array block
    else:
        # Big tiles to amortise per-step overhead, but >= 2 grid steps so both
        # v7x TensorCores see work under the "parallel" batch axis.
        eff_tile = _round_up(min(target_packed_tile,
                                 _round_up(pl.cdiv(bp, 2), 8)), 8)
    num_tiles = pl.cdiv(bp, eff_tile)
    # Last block may be partial: OOB output rows are masked on store, so no
    # padding of x to a tile multiple and no out[:B8*tile] slicing (item #4).

    itemsize = jnp.dtype(jnp.float32).itemsize
    cost = pl.CostEstimate(
        flops=2 * bp * (in_p * hid_p + hid_p * out_p),   # includes 8x BD inflation
        transcendentals=0,
        bytes_accessed=(bp * (in_p + out_p) * itemsize
                        + (in_p * hid_p + hid_p + hid_p * out_p + out_p) * itemsize),
    )

    outp = pl.pallas_call(
        _mlp_kernel,
        out_shape=jax.ShapeDtypeStruct((bp, out_p), jnp.float32),
        grid_spec=pltpu.PrefetchScalarGridSpec(
            num_scalar_prefetch=0,
            grid=(num_tiles,),
            in_specs=[
                pl.BlockSpec((eff_tile, in_p), lambda i: (i, 0)),   # packed x tile
                pl.BlockSpec((in_p, hid_p), lambda i: (0, 0)),      # W1 block-diag (resident)
                pl.BlockSpec((1, hid_p), lambda i: (0, 0)),         # b1 tiled
                pl.BlockSpec((hid_p, out_p), lambda i: (0, 0)),     # W2 block-diag (resident)
                pl.BlockSpec((1, out_p), lambda i: (0, 0)),         # b2 tiled
            ],
            out_specs=pl.BlockSpec((eff_tile, out_p), lambda i: (i, 0)),
        ),
        compiler_params=pltpu.CompilerParams(
            dimension_semantics=("parallel",),      # shard batch tiles across TCs (v7x)
        ),
        cost_estimate=cost,
    )(xp, w1_bd, b1_t, w2_bd, b2_t)

    out = outp.reshape(b8, out_dim)                 # free (contiguous) reshape
    return out[:B] if b8 != B else out


def init_params(key, input_size, hidden_size, out_size=OUT_DIM):
    """Deterministic init mimicking nn.Linear defaults (uniform +/- 1/sqrt(fan_in))."""
    k1, k2, k3, k4 = jax.random.split(key, 4)
    bound1 = 1.0 / jnp.sqrt(jnp.float32(input_size))
    bound2 = 1.0 / jnp.sqrt(jnp.float32(hidden_size))
    w1 = jax.random.uniform(k1, (input_size, hidden_size), jnp.float32, -bound1, bound1)
    b1 = jax.random.uniform(k2, (1, hidden_size), jnp.float32, -bound1, bound1)
    w2 = jax.random.uniform(k3, (hidden_size, out_size), jnp.float32, -bound2, bound2)
    b2 = jax.random.uniform(k4, (1, out_size), jnp.float32, -bound2, bound2)
    return w1, b1, w2, b2


if __name__ == "__main__":
    key = jax.random.PRNGKey(0)
    kx, kp = jax.random.split(key)

    input_size, hidden_size = 16, 32
    w1, b1, w2, b2 = init_params(kp, input_size, hidden_size)

    def ref_fwd(xx):
        return jnp.maximum(xx @ w1 + b1, 0.0) @ w2 + b2

    # Tolerance covers possible bf16-pass MXU f32 matmuls (TPU default matmul
    # precision) on either side; structural bugs would produce O(1) errors.
    def check(a, b):
        assert a.shape == b.shape, (a.shape, b.shape)
        assert jnp.allclose(a, b, atol=2e-2, rtol=2e-2), \
            float(jnp.max(jnp.abs(a - b)))

    # Case 1: B % 8 != 0 -> small pad-to-8, single full-array block.
    x1 = jax.random.normal(kx, (20, input_size), jnp.float32)
    out1 = jax.block_until_ready(radius_network_forward(x1, w1, b1, w2, b2))
    check(out1, ref_fwd(x1))

    # Case 2: multiple of 8, forced small tile -> 2-step "parallel" grid.
    x2 = jax.random.normal(jax.random.fold_in(kx, 1), (128, input_size), jnp.float32)
    out2 = jax.block_until_ready(
        radius_network_forward(x2, w1, b1, w2, b2, target_packed_tile=8))
    check(out2, ref_fwd(x2))

    # Case 3: packed rows (25) not a multiple of the tile (16) -> exercises the
    # masked out-of-bounds store on the partial last block (no pad/slice copies).
    x3 = jax.random.normal(jax.random.fold_in(kx, 2), (200, input_size), jnp.float32)
    out3 = jax.block_until_ready(radius_network_forward(x3, w1, b1, w2, b2))
    check(out3, ref_fwd(x3))

    print("KERNEL_OK")
</pallas_src>

<mosaic_0001>
module attributes {stable_mosaic.version = 11 : i64} {
  func.func @_mlp_kernel(%arg0: i32, %arg1: memref<3x128xf32, #tpu.memory_space<vmem>>, %arg2: memref<128x256xf32, #tpu.memory_space<vmem>>, %arg3: memref<1x256xf32, #tpu.memory_space<vmem>>, %arg4: memref<256x312xf32, #tpu.memory_space<vmem>>, %arg5: memref<1x312xf32, #tpu.memory_space<vmem>>, %arg6: memref<3x312xf32, #tpu.memory_space<vmem>>) attributes {dimension_semantics = [#tpu.dimension_semantics<parallel>], iteration_bounds = array<i64: 1>, scalar_prefetch = 0 : i64, scratch_operands = 0 : i64, tpu.core_type = #tpu.core_type<tc>, window_params = [{transform_indices = @transform_0, window_bounds = array<i64: 3, 128>}, {pipeline_mode = #tpu.pipeline_mode<synchronous>, transform_indices = @transform_1, window_bounds = array<i64: 128, 256>}, {pipeline_mode = #tpu.pipeline_mode<synchronous>, transform_indices = @transform_2, window_bounds = array<i64: 1, 256>}, {pipeline_mode = #tpu.pipeline_mode<synchronous>, transform_indices = @transform_3, window_bounds = array<i64: 256, 312>}, {pipeline_mode = #tpu.pipeline_mode<synchronous>, transform_indices = @transform_4, window_bounds = array<i64: 1, 312>}, {transform_indices = @transform_5, window_bounds = array<i64: 3, 312>}]} {
    %c0 = arith.constant 0 : index
    %c0_0 = arith.constant 0 : index
    %0 = vector.load %arg1[%c0, %c0_0] : memref<3x128xf32, #tpu.memory_space<vmem>>, vector<3x128xf32>
    %c0_1 = arith.constant 0 : index
    %c0_2 = arith.constant 0 : index
    %1 = vector.load %arg2[%c0_1, %c0_2] : memref<128x256xf32, #tpu.memory_space<vmem>>, vector<128x256xf32>
    %cst = arith.constant dense<0.000000e+00> : vector<3x256xf32>
    %2 = tpu.matmul %0, %1, %cst {dimension_numbers = #tpu.dot_dimension_numbers<[1], [0], [0], [1], [0, 0, 1, 1], [], []>} : vector<3x128xf32>, vector<128x256xf32>, vector<3x256xf32> -> vector<3x256xf32>
    %c0_3 = arith.constant 0 : index
    %c0_4 = arith.constant 0 : index
    %3 = vector.load %arg3[%c0_3, %c0_4] : memref<1x256xf32, #tpu.memory_space<vmem>>, vector<1x256xf32>
    %4 = vector.broadcast %3 : vector<1x256xf32> to vector<3x256xf32>
    %5 = arith.addf %2, %4 : vector<3x256xf32>
    %cst_5 = arith.constant 0.000000e+00 : f32
    %6 = vector.broadcast %cst_5 : f32 to vector<3x256xf32>
    %7 = arith.maximumf %5, %6 : vector<3x256xf32>
    %c0_6 = arith.constant 0 : index
    %c0_7 = arith.constant 0 : index
    %8 = vector.load %arg4[%c0_6, %c0_7] : memref<256x312xf32, #tpu.memory_space<vmem>>, vector<256x312xf32>
    %cst_8 = arith.constant dense<0.000000e+00> : vector<3x312xf32>
    %9 = tpu.matmul %7, %8, %cst_8 {dimension_numbers = #tpu.dot_dimension_numbers<[1], [0], [0], [1], [0, 0, 1, 1], [], []>} : vector<3x256xf32>, vector<256x312xf32>, vector<3x312xf32> -> vector<3x312xf32>
    %c0_9 = arith.constant 0 : index
    %c0_10 = arith.constant 0 : index
    %10 = vector.load %arg5[%c0_9, %c0_10] : memref<1x312xf32, #tpu.memory_space<vmem>>, vector<1x312xf32>
    %11 = vector.broadcast %10 : vector<1x312xf32> to vector<3x312xf32>
    %12 = arith.addf %9, %11 : vector<3x312xf32>
    %c0_11 = arith.constant 0 : index
    %c0_12 = arith.constant 0 : index
    %13 = vector.load %arg6[%c0_11, %c0_12] : memref<3x312xf32, #tpu.memory_space<vmem>>, vector<3x312xf32>
    tpu.vector_store %arg6[%c0_11, %c0_12], %12 {strides = array<i32>} : memref<3x312xf32, #tpu.memory_space<vmem>>, vector<3x312xf32>,
    return
  }
  func.func @transform_0(%arg0: i32) -> (i32, i32) {
    %c0_i32 = arith.constant 0 : i32
    %c0_i32_0 = arith.constant 0 : i32
    return %arg0, %c0_i32 : i32, i32
  }
  func.func @transform_1(%arg0: i32) -> (i32, i32) {
    %c0_i32 = arith.constant 0 : i32
    %c0_i32_0 = arith.constant 0 : i32
    %c0_i32_1 = arith.constant 0 : i32
    return %c0_i32, %c0_i32_0 : i32, i32
  }
  func.func @transform_2(%arg0: i32) -> (i32, i32) {
    %c0_i32 = arith.constant 0 : i32
    %c0_i32_0 = arith.constant 0 : i32
    %c0_i32_1 = arith.constant 0 : i32
    return %c0_i32, %c0_i32_0 : i32, i32
  }
  func.func @transform_3(%arg0: i32) -> (i32, i32) {
    %c0_i32 = arith.constant 0 : i32
    %c0_i32_0 = arith.constant 0 : i32
    %c0_i32_1 = arith.constant 0 : i32
    return %c0_i32, %c0_i32_0 : i32, i32
  }
  func.func @transform_4(%arg0: i32) -> (i32, i32) {
    %c0_i32 = arith.constant 0 : i32
    %c0_i32_0 = arith.constant 0 : i32
    %c0_i32_1 = arith.constant 0 : i32
    return %c0_i32, %c0_i32_0 : i32, i32
  }
  func.func @transform_5(%arg0: i32) -> (i32, i32) {
    %c0_i32 = arith.constant 0 : i32
    %c0_i32_0 = arith.constant 0 : i32
    return %arg0, %c0_i32 : i32, i32
  }
}

</mosaic_0001>

<llo_original>
// kernel: tpu_custom_call.1
$region0: #{tpu_custom_call.1}
  #allocation0 [shape = 'u32[]', space=smem, size = 0x4, offset = 0x4, fixed_abs, tag = 'smem constant byte address 0x4 - core index']
  #allocation1 [shape = 'u32[144,128]{1,0:T(1,128)}', space=vmem, size = 0x12000, scoped, tag = 'internal scratch']
  %s0 = inlined_call_operand.vmem [shape: f32[3,128], index: 0, kind: input, shape index: {}]
  %s1 = inlined_call_operand.vmem [shape: f32[128,256], index: 1, kind: input, shape index: {}]
  %s2 = inlined_call_operand.vmem [shape: f32[1,256], index: 2, kind: input, shape index: {}]
  %s3 = inlined_call_operand.vmem [shape: f32[256,312], index: 3, kind: input, shape index: {}]
  %s4 = inlined_call_operand.vmem [shape: f32[1,312], index: 4, kind: input, shape index: {}]
  %s5 = inlined_call_operand.hbm [shape: f32[3,312], index: 5, kind: output, shape index: {}]
  %s6 = sld [smem:[#allocation0]]
  $region30: #{tpu_custom_call.1} parent=0
    _
  %s8 = ssub.s32 1, %s6
  %s9 = scalar_select 0, %s8, %s6
  $region1: #{tpu_custom_call.1} parent=0
    #allocation2 [shape = 'u8[6144]{0}', space=vmem, size = 0x1800, scoped, tag = 'output window, operand 0, single buffered']
    #allocation3 [shape = 's32[1]{0}', space=sflag, size = 0x4, scoped, tag = 'scoped memory for tpu_custom_call.1']
    %10 = vsyncpa [#allocation3], 0
    // Predicated region
    $region2: #{tpu_custom_call.1} parent=1 // pred_check
      _
    $region3: #{tpu_custom_call.1} parent=1 // pred_check_branch
      %12 = sbr.rel (0) target = $region5
    $region4: #{tpu_custom_call.1} parent=1 // pred_region
      _
    $region5: #{tpu_custom_call.1} parent=1 // pred_fallthru
      _
    // Predicated region
    $region6: #{tpu_custom_call.1} parent=1 // pred_check
      _
    $region7: #{tpu_custom_call.1} parent=1 // pred_check_branch
      %14 = sbr.rel (0) target = $region9
    $region8: #{tpu_custom_call.1} parent=1 // pred_region
      _
    $region9: #{tpu_custom_call.1} parent=1 // pred_fallthru
      _
    // Predicated region
    $region10: #{tpu_custom_call.1} parent=1 // pred_check
      _
    $region11: #{tpu_custom_call.1} parent=1 // pred_check_branch
      %16 = sbr.rel (0) target = $region13
    $region12: #{tpu_custom_call.1} parent=1 // pred_region
      _
    $region13: #{tpu_custom_call.1} parent=1 // pred_fallthru
      _
    // Predicated region
    $region14: #{tpu_custom_call.1} parent=1 // pred_check
      _
    $region15: #{tpu_custom_call.1} parent=1 // pred_check_branch
      %18 = sbr.rel (0) target = $region17
    $region16: #{tpu_custom_call.1} parent=1 // pred_region
      _
    $region17: #{tpu_custom_call.1} parent=1 // pred_fallthru
      _
    // Predicated region
    $region18: #{tpu_custom_call.1} parent=1 // pred_check
      _
    $region19: #{tpu_custom_call.1} parent=1 // pred_check_branch
      %20 = sbr.rel (0) target = $region21
    $region20: #{tpu_custom_call.1} parent=1 // pred_region
      _
    $region21: #{tpu_custom_call.1} parent=1 // pred_fallthru
      _
    %v21 = vld [vmem:[%s0] sm:$0x7]
    %v22 = vld [vmem:[%s1] sm:$0xff]
    %v23 = vld [vmem:[%s1 + $0x8] sm:$0xff]
    %v24 = vld [vmem:[%s1 + $0x10] sm:$0xff]
    %v25 = vld [vmem:[%s1 + $0x18] sm:$0xff]
    %v26 = vld [vmem:[%s1 + $0x20] sm:$0xff]
    %v27 = vld [vmem:[%s1 + $0x28] sm:$0xff]
    %v28 = vld [vmem:[%s1 + $0x30] sm:$0xff]
    %v29 = vld [vmem:[%s1 + $0x38] sm:$0xff]
    %v30 = vld [vmem:[%s1 + $0x40] sm:$0xff]
    %v31 = vld [vmem:[%s1 + $0x48] sm:$0xff]
    %v32 = vld [vmem:[%s1 + $0x50] sm:$0xff]
    %v33 = vld [vmem:[%s1 + $0x58] sm:$0xff]
    %v34 = vld [vmem:[%s1 + $0x60] sm:$0xff]
    %v35 = vld [vmem:[%s1 + $0x68] sm:$0xff]
    %v36 = vld [vmem:[%s1 + $0x70] sm:$0xff]
    %v37 = vld [vmem:[%s1 + $0x78] sm:$0xff]
    %v38 = vld [vmem:[%s1 + $0x80] sm:$0xff]
    %v39 = vld [vmem:[%s1 + $0x88] sm:$0xff]
    %v40 = vld [vmem:[%s1 + $0x90] sm:$0xff]
    %v41 = vld [vmem:[%s1 + $0x98] sm:$0xff]
    %v42 = vld [vmem:[%s1 + $0xa0] sm:$0xff]
    %v43 = vld [vmem:[%s1 + $0xa8] sm:$0xff]
    %v44 = vld [vmem:[%s1 + $0xb0] sm:$0xff]
    %v45 = vld [vmem:[%s1 + $0xb8] sm:$0xff]
    %v46 = vld [vmem:[%s1 + $0xc0] sm:$0xff]
    %v47 = vld [vmem:[%s1 + $0xc8] sm:$0xff]
    %v48 = vld [vmem:[%s1 + $0xd0] sm:$0xff]
    %v49 = vld [vmem:[%s1 + $0xd8] sm:$0xff]
    %v50 = vld [vmem:[%s1 + $0xe0] sm:$0xff]
    %v51 = vld [vmem:[%s1 + $0xe8] sm:$0xff]
    %v52 = vld [vmem:[%s1 + $0xf0] sm:$0xff]
    %v53 = vld [vmem:[%s1 + $0xf8] sm:$0xff]
    %v54 = vld [vmem:[%s2] sm:$0x3]
    %v56 = vlaneseq
    %v57 = vshrl.u32 %v56, 7
    %v58 = vsub.s32 0, %v57
    %v59 = vrot.slane %v54, %v58
    %v60 = vlaneseq
    %v61 = vshrl.u32 %v60, 7
    %v62 = vsub.s32 1, %v61
    %v63 = vrot.slane %v54, %v62
    %66 = vmatprep.subr.mxu0 %v23
    %67 = vmatpush1.msra.mxu0 %v22
    %68 = vmatprep.subr.mxu0 %v25
    %69 = vmatpush1.msra.mxu0 %v24
    %70 = vmatprep.subr.mxu0 %v27
    %71 = vmatpush1.msra.mxu0 %v26
    %72 = vmatprep.subr.mxu0 %v29
    %73 = vmatpush1.msra.mxu0 %v28
    %74 = vmatprep.subr.mxu0 %v31
    %75 = vmatpush1.msra.mxu0 %v30
    %76 = vmatprep.subr.mxu0 %v33
    %77 = vmatpush1.msra.mxu0 %v32
    %78 = vmatprep.subr.mxu0 %v35
    %79 = vmatpush1.msra.mxu0 %v34
    %80 = vmatprep.subr.mxu0 %v37
    %81 = vmatpush1.msra.mxu0 %v36
    %82 = vmatprep.subr.mxu0 %v39
    %83 = vmatpush1.msra.mxu0 %v38
    %84 = vmatprep.subr.mxu0 %v41
    %85 = vmatpush1.msra.mxu0 %v40
    %86 = vmatprep.subr.mxu0 %v43
    %87 = vmatpush1.msra.mxu0 %v42
    %88 = vmatprep.subr.mxu0 %v45
    %89 = vmatpush1.msra.mxu0 %v44
    %90 = vmatprep.subr.mxu0 %v47
    %91 = vmatpush1.msra.mxu0 %v46
    %92 = vmatprep.subr.mxu0 %v49
    %93 = vmatpush1.msra.mxu0 %v48
    %94 = vmatprep.subr.mxu0 %v51
    %95 = vmatpush1.msra.mxu0 %v50
    %96 = vmatprep.subr.mxu0 %v53
    %97 = vmatpush1.msra.mxu0 %v52
    %98 = vmatprep.subr.mxu0 0.0
    %99 = vmatpush1.msra.mxu0 0.0
    %100 = vmatprep.subr.mxu0 0.0
    %101 = vmatpush1.msra.mxu0 0.0
    %102 = vmatprep.subr.mxu0 0.0
    %103 = vmatpush1.msra.mxu0 0.0
    %104 = vmatprep.subr.mxu0 0.0
    %105 = vmatpush1.msra.mxu0 0.0
    %106 = vmatprep.subr.mxu0 0.0
    %107 = vmatpush1.msra.mxu0 0.0
    %108 = vmatprep.subr.mxu0 0.0
    %109 = vmatpush1.msra.mxu0 0.0
    %110 = vmatprep.subr.mxu0 0.0
    %111 = vmatpush1.msra.mxu0 0.0
    %112 = vmatprep.subr.mxu0 0.0
    %113 = vmatpush1.msra.mxu0 0.0
    %114 = vmatprep.subr.mxu0 0.0
    %115 = vmatpush1.msra.mxu0 0.0
    %116 = vmatprep.subr.mxu0 0.0
    %117 = vmatpush1.msra.mxu0 0.0
    %118 = vmatprep.subr.mxu0 0.0
    %119 = vmatpush1.msra.mxu0 0.0
    %120 = vmatprep.subr.mxu0 0.0
    %121 = vmatpush1.msra.mxu0 0.0
    %122 = vmatprep.subr.mxu0 0.0
    %123 = vmatpush1.msra.mxu0 0.0
    %124 = vmatprep.subr.mxu0 0.0
    %125 = vmatpush1.msra.mxu0 0.0
    %126 = vmatprep.subr.mxu0 0.0
    %127 = vmatpush1.msra.mxu0 0.0
    %128 = vmatprep.subr.mxu0 0.0
    %129 = vmatpush1.msra.mxu0 0.0
    %130 = vmatprep.mubr.f32.mxu0 0.0
    %131 = vmatmul.mubr.f32.gmra.mrb[0].mxu0 %v21
    %v132 = vpop.f32.mrb[0].mxu0
    %v133 = vadd.f32 %v59, %v132
    %v134 = vpop.f32.mrb[0].mxu0
    %v135 = vadd.f32 %v63, %v134
    %136 = vdwg.mxu0
    %v137 = vmax.f32 %v133, 0.0
    %v138 = vmax.f32 %v135, 0.0
    %v139 = vld [vmem:[%s3] sm:$0xff]
    %v140 = vld [vmem:[%s3 + $0x8] sm:$0xff]
    %v141 = vld [vmem:[%s3 + $0x10] sm:$0xff]
    %v142 = vld [vmem:[%s3 + $0x18] sm:$0xff]
    %v143 = vld [vmem:[%s3 + $0x20] sm:$0xff]
    %v144 = vld [vmem:[%s3 + $0x28] sm:$0xff]
    %v145 = vld [vmem:[%s3 + $0x30] sm:$0xff]
    %v146 = vld [vmem:[%s3 + $0x38] sm:$0xff]
    %v147 = vld [vmem:[%s3 + $0x40] sm:$0xff]
    %v148 = vld [vmem:[%s3 + $0x48] sm:$0xff]
    %v149 = vld [vmem:[%s3 + $0x50] sm:$0xff]
    %v150 = vld [vmem:[%s3 + $0x58] sm:$0xff]
    %v151 = vld [vmem:[%s3 + $0x60] sm:$0xff]
    %v152 = vld [vmem:[%s3 + $0x68] sm:$0xff]
    %v153 = vld [vmem:[%s3 + $0x70] sm:$0xff]
    %v154 = vld [vmem:[%s3 + $0x78] sm:$0xff]
    %v155 = vld [vmem:[%s3 + $0x80] sm:$0xff]
    %v156 = vld [vmem:[%s3 + $0x88] sm:$0xff]
    %v157 = vld [vmem:[%s3 + $0x90] sm:$0xff]
    %v158 = vld [vmem:[%s3 + $0x98] sm:$0xff]
    %v159 = vld [vmem:[%s3 + $0xa0] sm:$0xff]
    %v160 = vld [vmem:[%s3 + $0xa8] sm:$0xff]
    %v161 = vld [vmem:[%s3 + $0xb0] sm:$0xff]
    %v162 = vld [vmem:[%s3 + $0xb8] sm:$0xff]
    %v163 = vld [vmem:[%s3 + $0xc0] sm:$0xff]
    %v164 = vld [vmem:[%s3 + $0xc8] sm:$0xff]
    %v165 = vld [vmem:[%s3 + $0xd0] sm:$0xff]
    %v166 = vld [vmem:[%s3 + $0xd8] sm:$0xff]
    %v167 = vld [vmem:[%s3 + $0xe0] sm:$0xff]
    %v168 = vld [vmem:[%s3 + $0xe8] sm:$0xff]
    %v169 = vld [vmem:[%s3 + $0xf0] sm:$0xff]
    %v170 = vld [vmem:[%s3 + $0xf8] sm:$0xff]
    %v171 = vld [vmem:[%s3 + $0x100] sm:$0xff]
    %v172 = vld [vmem:[%s3 + $0x108] sm:$0xff]
    %v173 = vld [vmem:[%s3 + $0x110] sm:$0xff]
    %v174 = vld [vmem:[%s3 + $0x118] sm:$0xff]
    %v175 = vld [vmem:[%s3 + $0x120] sm:$0xff]
    %v176 = vld [vmem:[%s3 + $0x128] sm:$0xff]
    %v177 = vld [vmem:[%s3 + $0x130] sm:$0xff]
    %v178 = vld [vmem:[%s3 + $0x138] sm:$0xff]
    %v179 = vld [vmem:[%s3 + $0x140] sm:$0xff]
    %v180 = vld [vmem:[%s3 + $0x148] sm:$0xff]
    %v181 = vld [vmem:[%s3 + $0x150] sm:$0xff]
    %v182 = vld [vmem:[%s3 + $0x158] sm:$0xff]
    %v183 = vld [vmem:[%s3 + $0x160] sm:$0xff]
    %v184 = vld [vmem:[%s3 + $0x168] sm:$0xff]
    %v185 = vld [vmem:[%s3 + $0x170] sm:$0xff]
    %v186 = vld [vmem:[%s3 + $0x178] sm:$0xff]
    %v187 = vld [vmem:[%s3 + $0x180] sm:$0xff]
    %v188 = vld [vmem:[%s3 + $0x188] sm:$0xff]
    %v189 = vld [vmem:[%s3 + $0x190] sm:$0xff]
    %v190 = vld [vmem:[%s3 + $0x198] sm:$0xff]
    %v191 = vld [vmem:[%s3 + $0x1a0] sm:$0xff]
    %v192 = vld [vmem:[%s3 + $0x1a8] sm:$0xff]
    %v193 = vld [vmem:[%s3 + $0x1b0] sm:$0xff]
    %v194 = vld [vmem:[%s3 + $0x1b8] sm:$0xff]
    %v195 = vld [vmem:[%s3 + $0x1c0] sm:$0xff]
    %v196 = vld [vmem:[%s3 + $0x1c8] sm:$0xff]
    %v197 = vld [vmem:[%s3 + $0x1d0] sm:$0xff]
    %v198 = vld [vmem:[%s3 + $0x1d8] sm:$0xff]
    %v199 = vld [vmem:[%s3 + $0x1e0] sm:$0xff]
    %v200 = vld [vmem:[%s3 + $0x1e8] sm:$0xff]
    %v201 = vld [vmem:[%s3 + $0x1f0] sm:$0xff]
    %v202 = vld [vmem:[%s3 + $0x1f8] sm:$0xff]
    %v203 = vld [vmem:[%s3 + $0x200] sm:$0xff]
    %v204 = vld [vmem:[%s3 + $0x208] sm:$0xff]
    %v205 = vld [vmem:[%s3 + $0x210] sm:$0xff]
    %v206 = vld [vmem:[%s3 + $0x218] sm:$0xff]
    %v207 = vld [vmem:[%s3 + $0x220] sm:$0xff]
    %v208 = vld [vmem:[%s3 + $0x228] sm:$0xff]
    %v209 = vld [vmem:[%s3 + $0x230] sm:$0xff]
    %v210 = vld [vmem:[%s3 + $0x238] sm:$0xff]
    %v211 = vld [vmem:[%s3 + $0x240] sm:$0xff]
    %v212 = vld [vmem:[%s3 + $0x248] sm:$0xff]
    %v213 = vld [vmem:[%s3 + $0x250] sm:$0xff]
    %v214 = vld [vmem:[%s3 + $0x258] sm:$0xff]
    %v215 = vld [vmem:[%s3 + $0x260] sm:$0xff]
    %v216 = vld [vmem:[%s3 + $0x268] sm:$0xff]
    %v217 = vld [vmem:[%s3 + $0x270] sm:$0xff]
    %v218 = vld [vmem:[%s3 + $0x278] sm:$0xff]
    %v219 = vld [vmem:[%s3 + $0x280] sm:$0xff]
    %v220 = vld [vmem:[%s3 + $0x288] sm:$0xff]
    %v221 = vld [vmem:[%s3 + $0x290] sm:$0xff]
    %v222 = vld [vmem:[%s3 + $0x298] sm:$0xff]
    %v223 = vld [vmem:[%s3 + $0x2a0] sm:$0xff]
    %v224 = vld [vmem:[%s3 + $0x2a8] sm:$0xff]
    %v225 = vld [vmem:[%s3 + $0x2b0] sm:$0xff]
    %v226 = vld [vmem:[%s3 + $0x2b8] sm:$0xff]
    %v227 = vld [vmem:[%s3 + $0x2c0] sm:$0xff]
    %v228 = vld [vmem:[%s3 + $0x2c8] sm:$0xff]
    %v229 = vld [vmem:[%s3 + $0x2d0] sm:$0xff]
    %v230 = vld [vmem:[%s3 + $0x2d8] sm:$0xff]
    %v231 = vld [vmem:[%s3 + $0x2e0] sm:$0xff]
    %v232 = vld [vmem:[%s3 + $0x2e8] sm:$0xff]
    %v233 = vld [vmem:[%s3 + $0x2f0] sm:$0xff]
    %v234 = vld [vmem:[%s3 + $0x2f8] sm:$0xff]
    %v235 = vld [vmem:[%s4] sm:$0x7]
    %v237 = vlaneseq
    %v238 = vshrl.u32 %v237, 7
    %v239 = vsub.s32 0, %v238
    %v240 = vrot.slane %v235, %v239
    %v241 = vlaneseq
    %v242 = vshrl.u32 %v241, 7
    %v243 = vsub.s32 1, %v242
    %v244 = vrot.slane %v235, %v243
    %v245 = vlaneseq
    %v246 = vshrl.u32 %v245, 7
    %v247 = vsub.s32 2, %v246
    %v248 = vrot.slane %v235, %v247
    %252 = vmatprep.subr.mxu0 %v140
    %253 = vmatpush1.msra.mxu0 %v139
    %254 = vmatprep.subr.mxu0 %v143
    %255 = vmatpush1.msra.mxu0 %v142
    %256 = vmatprep.subr.mxu0 %v146
    %257 = vmatpush1.msra.mxu0 %v145
    %258 = vmatprep.subr.mxu0 %v149
    %259 = vmatpush1.msra.mxu0 %v148
    %260 = vmatprep.subr.mxu0 %v152
    %261 = vmatpush1.msra.mxu0 %v151
    %262 = vmatprep.subr.mxu0 %v155
    %263 = vmatpush1.msra.mxu0 %v154
    %264 = vmatprep.subr.mxu0 %v158
    %265 = vmatpush1.msra.mxu0 %v157
    %266 = vmatprep.subr.mxu0 %v161
    %267 = vmatpush1.msra.mxu0 %v160
    %268 = vmatprep.subr.mxu0 %v164
    %269 = vmatpush1.msra.mxu0 %v163
    %270 = vmatprep.subr.mxu0 %v167
    %271 = vmatpush1.msra.mxu0 %v166
    %272 = vmatprep.subr.mxu0 %v170
    %273 = vmatpush1.msra.mxu0 %v169
    %274 = vmatprep.subr.mxu0 %v173
    %275 = vmatpush1.msra.mxu0 %v172
    %276 = vmatprep.subr.mxu0 %v176
    %277 = vmatpush1.msra.mxu0 %v175
    %278 = vmatprep.subr.mxu0 %v179
    %279 = vmatpush1.msra.mxu0 %v178
    %280 = vmatprep.subr.mxu0 %v182
    %281 = vmatpush1.msra.mxu0 %v181
    %282 = vmatprep.subr.mxu0 %v185
    %283 = vmatpush1.msra.mxu0 %v184
    %284 = vmatprep.subr.mxu0 %v188
    %285 = vmatpush1.msra.mxu0 %v187
    %286 = vmatprep.subr.mxu0 %v191
    %287 = vmatpush1.msra.mxu0 %v190
    %288 = vmatprep.subr.mxu0 %v194
    %289 = vmatpush1.msra.mxu0 %v193
    %290 = vmatprep.subr.mxu0 %v197
    %291 = vmatpush1.msra.mxu0 %v196
    %292 = vmatprep.subr.mxu0 %v200
    %293 = vmatpush1.msra.mxu0 %v199
    %294 = vmatprep.subr.mxu0 %v203
    %295 = vmatpush1.msra.mxu0 %v202
    %296 = vmatprep.subr.mxu0 %v206
    %297 = vmatpush1.msra.mxu0 %v205
    %298 = vmatprep.subr.mxu0 %v209
    %299 = vmatpush1.msra.mxu0 %v208
    %300 = vmatprep.subr.mxu0 %v212
    %301 = vmatpush1.msra.mxu0 %v211
    %302 = vmatprep.subr.mxu0 %v215
    %303 = vmatpush1.msra.mxu0 %v214
    %304 = vmatprep.subr.mxu0 %v218
    %305 = vmatpush1.msra.mxu0 %v217
    %306 = vmatprep.subr.mxu0 %v221
    %307 = vmatpush1.msra.mxu0 %v220
    %308 = vmatprep.subr.mxu0 %v224
    %309 = vmatpush1.msra.mxu0 %v223
    %310 = vmatprep.subr.mxu0 %v227
    %311 = vmatpush1.msra.mxu0 %v226
    %312 = vmatprep.subr.mxu0 %v230
    %313 = vmatpush1.msra.mxu0 %v229
    %314 = vmatprep.subr.mxu0 %v233
    %315 = vmatpush1.msra.mxu0 %v232
    %316 = vmatprep.mubr.f32.mxu0 %v138
    %317 = vmatmul.mubr.f32.gmra.mrb[0].mxu0 %v137
    %v318 = vpop.f32.mrb[0].mxu0
    %v319 = vadd.f32 %v240, %v318
    %v320 = vpop.f32.mrb[0].mxu0
    %v321 = vadd.f32 %v244, %v320
    %322 = vdwg.mxu0
    %323 = vmatprep.subr.mxu0 0.0
    %324 = vmatpush1.msra.mxu0 %v141
    %325 = vmatprep.subr.mxu0 0.0
    %326 = vmatpush1.msra.mxu0 %v144
    %327 = vmatprep.subr.mxu0 0.0
    %328 = vmatpush1.msra.mxu0 %v147
    %329 = vmatprep.subr.mxu0 0.0
    %330 = vmatpush1.msra.mxu0 %v150
    %331 = vmatprep.subr.mxu0 0.0
    %332 = vmatpush1.msra.mxu0 %v153
    %333 = vmatprep.subr.mxu0 0.0
    %334 = vmatpush1.msra.mxu0 %v156
    %335 = vmatprep.subr.mxu0 0.0
    %336 = vmatpush1.msra.mxu0 %v159
    %337 = vmatprep.subr.mxu0 0.0
    %338 = vmatpush1.msra.mxu0 %v162
    %339 = vmatprep.subr.mxu0 0.0
    %340 = vmatpush1.msra.mxu0 %v165
    %341 = vmatprep.subr.mxu0 0.0
    %342 = vmatpush1.msra.mxu0 %v168
    %343 = vmatprep.subr.mxu0 0.0
    %344 = vmatpush1.msra.mxu0 %v171
    %345 = vmatprep.subr.mxu0 0.0
    %346 = vmatpush1.msra.mxu0 %v174
    %347 = vmatprep.subr.mxu0 0.0
    %348 = vmatpush1.msra.mxu0 %v177
    %349 = vmatprep.subr.mxu0 0.0
    %350 = vmatpush1.msra.mxu0 %v180
    %351 = vmatprep.subr.mxu0 0.0
    %352 = vmatpush1.msra.mxu0 %v183
    %353 = vmatprep.subr.mxu0 0.0
    %354 = vmatpush1.msra.mxu0 %v186
    %355 = vmatprep.subr.mxu0 0.0
    %356 = vmatpush1.msra.mxu0 %v189
    %357 = vmatprep.subr.mxu0 0.0
    %358 = vmatpush1.msra.mxu0 %v192
    %359 = vmatprep.subr.mxu0 0.0
    %360 = vmatpush1.msra.mxu0 %v195
    %361 = vmatprep.subr.mxu0 0.0
    %362 = vmatpush1.msra.mxu0 %v198
    %363 = vmatprep.subr.mxu0 0.0
    %364 = vmatpush1.msra.mxu0 %v201
    %365 = vmatprep.subr.mxu0 0.0
    %366 = vmatpush1.msra.mxu0 %v204
    %367 = vmatprep.subr.mxu0 0.0
    %368 = vmatpush1.msra.mxu0 %v207
    %369 = vmatprep.subr.mxu0 0.0
    %370 = vmatpush1.msra.mxu0 %v210
    %371 = vmatprep.subr.mxu0 0.0
    %372 = vmatpush1.msra.mxu0 %v213
    %373 = vmatprep.subr.mxu0 0.0
    %374 = vmatpush1.msra.mxu0 %v216
    %375 = vmatprep.subr.mxu0 0.0
    %376 = vmatpush1.msra.mxu0 %v219
    %377 = vmatprep.subr.mxu0 0.0
    %378 = vmatpush1.msra.mxu0 %v222
    %379 = vmatprep.subr.mxu0 0.0
    %380 = vmatpush1.msra.mxu0 %v225
    %381 = vmatprep.subr.mxu0 0.0
    %382 = vmatpush1.msra.mxu0 %v228
    %383 = vmatprep.subr.mxu0 0.0
    %384 = vmatpush1.msra.mxu0 %v231
    %385 = vmatprep.subr.mxu0 0.0
    %386 = vmatpush1.msra.mxu0 %v234
    %387 = vmatprep.mubr.f32.mxu0 %v138
    %388 = vmatmul.mubr.f32.gmra.mrb[0].mxu0 %v137
    %v389 = vpop.f32.mrb[0].mxu0
    %v390 = vadd.f32 %v248, %v389
    %v391 = vpop.f32.mrb[0].mxu0
    %392 = vdwg.mxu0
    %v395 = vcombine.low %v319, %v321
    %397 = vst [vmem:[#allocation2] sm:$0x77] %v395
    %vm398 = vcmask 452608
    %399 = vst.msk [vmem:[#allocation2 + $0x8] sm:$0x7] %vm398, %v390
    // Predicated region
    $region22: #{tpu_custom_call.1} parent=1 // pred_check
      _
    $region23: #{tpu_custom_call.1} parent=1 // pred_check_branch
      %401 = sbr.rel (0) target = $region25
    $region24: #{tpu_custom_call.1} parent=1 // pred_region
      %s403 = ssub.s32 192, 192
      %404 = vsyncadd [#allocation3], %s403
      %s406 = sshll.u32 [#allocation2], 4
      %s407 = int_to_ptr.vmem [resolvable:$true] %s406
      %409 = dma.vmem_to_hbm [thread:$0]  %s407, 192, %s5, [#allocation3]
    $region25: #{tpu_custom_call.1} parent=1 // pred_fallthru
      _
    // Predicated region
    $region26: #{tpu_custom_call.1} parent=1 // pred_check
      _
    $region27: #{tpu_custom_call.1} parent=1 // pred_check_branch
      %411 = sbr.rel (0) target = $region29
    $region28: #{tpu_custom_call.1} parent=1 // pred_region
      %412 = dma.done [#allocation3], 192
    $region29: #{tpu_custom_call.1} parent=1 // pred_fallthru
      _
    %413 = vsyncpa [#allocation3], 1

</llo_original>
